<compile_context>
chip_gen: v7x
topology: tpu7x:2x2x1
jax: 0.10.0
libtpu: 0.0.40
codegen_flags: <defaults>
</compile_context>

<pallas_src>
from functools import partial

import jax
import jax.numpy as jnp
from jax import lax
from jax.experimental import pallas as pl
from jax.experimental.pallas import tpu as pltpu


# ----------------------------------------------------------------------------
# VMEM / tile sizing helpers
# ----------------------------------------------------------------------------
def _vmem_capacity_bytes():
    """Per-core VMEM capacity, conservatively clamped by the chip generation."""
    cap = 0
    try:
        cap = int(getattr(pltpu.get_tpu_info(), "vmem_capacity_bytes", 0))
    except Exception:
        cap = 0
    try:
        kind = jax.devices()[0].device_kind.lower()
        cap_kind = 64 * 2**20 if "v7" in kind else 128 * 2**20
    except Exception:
        cap_kind = 64 * 2**20
    if cap <= 0:
        return cap_kind
    return min(cap, cap_kind)


def _lane_pad(c):
    return ((c + 127) // 128) * 128


def _choose_tm(M, N, Cin, D, out_cols, vmem_cap):
    """Pillar-tile size from the lane-PADDED per-tile VMEM footprint."""
    per_pillar = 4 * (2 * N * _lane_pad(Cin)        # x block (double-buffered)
                      + 3 * N * _lane_pad(D)        # h / relu / max temporaries
                      + 2 * _lane_pad(out_cols))    # out block (double-buffered)
    budget = vmem_cap // 2                          # headroom for compiler scratch
    cap = 512 if vmem_cap <= 64 * 2**20 else 1024   # smaller tiles on v7x
    fit = max(8, min(cap, budget // per_pillar))
    if fit >= M:
        return M                                    # single tile, exact
    tm = max(8, (fit // 8) * 8)
    best = 0
    for t in range(tm, 7, -8):                      # prefer an exact divisor of M
        if M % t == 0:
            best = t
            break
    if best * 4 >= tm:
        return best
    return tm                                       # fallback: pad + tail slice


# ----------------------------------------------------------------------------
# Pass 1: per-core-split accumulation of colsum(x) and G = x^T x.
# ----------------------------------------------------------------------------
def _stats_kernel(x_ref, s_ref, g_ref):
    @pl.when(pl.program_id(1) == 0)
    def _():
        s_ref[...] = jnp.zeros_like(s_ref)
        g_ref[...] = jnp.zeros_like(g_ref)

    x = x_ref[...]                                               # (R, Cin) native dtype
    s_ref[...] += jnp.sum(x.astype(jnp.float32), axis=0,
                          keepdims=True)[None]                   # (1, 1, Cin)
    # Gram matrix on the MXU (x^T x), f32 accumulation.
    g_ref[...] += lax.dot_general(
        x, x, (((0,), (0,)), ((), ())),
        preferred_element_type=jnp.float32)[None]                # (1, Cin, Cin)


# ----------------------------------------------------------------------------
# Pass 2: relu(x @ W' + b'), per-pillar max over points, lane-dense output.
# ----------------------------------------------------------------------------
def _apply_kernel(x_ref, w_ref, b_ref, out_ref, *, tm, n, d, last_vfe):
    h = jnp.dot(x_ref[...], w_ref[...],
                preferred_element_type=jnp.float32)              # (tm*n, d) f32
    hr = jnp.maximum(h + b_ref[...], 0.0)                        # folded BN + ReLU
    hr3 = hr.reshape(tm, n, d)                                   # (tm, n, d)
    hmax = jnp.max(hr3, axis=1)                                  # (tm, d)

    if last_vfe:
        out_ref[...] = hmax.astype(out_ref.dtype)                # (tm, d)
    else:
        # Lane-dense output tile (tm, n*2d): interleave [h_j | max] per point.
        hr3 = hr3.astype(out_ref.dtype)
        hmax = hmax.astype(out_ref.dtype)
        two_d = 2 * d
        for j in range(n):                                       # static unroll
            base = j * two_d
            out_ref[:, base:base + d] = hr3[:, j, :]
            out_ref[:, base + d:base + two_d] = hmax


# ----------------------------------------------------------------------------
# Wrapper
# ----------------------------------------------------------------------------
def pfn_layer(inputs, weight, gamma=None, beta=None, bias=None, *,
              eps=1e-3, use_norm=True, last_layer=False, tm=None):
    """inputs: (B, P, N, Cin); weight: (D, Cin) (PyTorch nn.Linear layout)."""
    B, P, N, Cin = inputs.shape
    D = weight.shape[0]
    M = B * P
    out_cols = D if last_layer else N * 2 * D

    vmem_cap = _vmem_capacity_bytes()
    vmem_limit = int(min(0.75 * vmem_cap, 112 * 2**20))

    if tm is None:
        tm = _choose_tm(M, N, Cin, D, out_cols, vmem_cap)
    if tm >= M:
        tm = M
    elif tm % 8 != 0:
        tm = min(M, ((tm + 7) // 8) * 8)

    grid_m = -(-M // tm)
    Mp = grid_m * tm                               # pillar rows covered by pass 2
    R = tm * N                                     # point rows per tile

    # Dual-TensorCore split for the stats pass (only useful with >=2 tiles).
    n_split = 2 if grid_m >= 2 else 1
    gm2 = -(-grid_m // n_split)
    Ms = n_split * gm2 * tm                        # pillar rows the stats grid touches

    x2d = inputs.reshape(M * N, Cin)
    if Ms != M:
        # Zero rows contribute exactly 0 to colsum(x) and x^T x, so statistics
        # stay exact when normalized by the true count M*N.
        x2d = jnp.pad(x2d, ((0, (Ms - M) * N), (0, 0)))

    w_t = weight.T.astype(jnp.float32)             # (Cin, D)

    cp_stats = pltpu.CompilerParams(
        dimension_semantics=("parallel", "arbitrary"),
        vmem_limit_bytes=vmem_limit)
    cp_apply = pltpu.CompilerParams(
        dimension_semantics=("parallel",),
        vmem_limit_bytes=vmem_limit)

    if use_norm:
        s_parts, g_parts = pl.pallas_call(
            _stats_kernel,
            grid=(n_split, gm2),
            in_specs=[pl.BlockSpec((R, Cin), lambda c, i: (c * gm2 + i, 0))],
            out_specs=(
                pl.BlockSpec((1, 1, Cin), lambda c, i: (c, 0, 0)),
                pl.BlockSpec((1, Cin, Cin), lambda c, i: (c, 0, 0)),
            ),
            out_shape=(
                jax.ShapeDtypeStruct((n_split, 1, Cin), jnp.float32),
                jax.ShapeDtypeStruct((n_split, Cin, Cin), jnp.float32),
            ),
            compiler_params=cp_stats,
        )(x2d)

        count = float(M * N)                       # true count (padding added 0)
        colsum = s_parts.sum(axis=0)               # (1, Cin)
        gram = g_parts.sum(axis=0)                 # (Cin, Cin)
        mean = jnp.dot(colsum, w_t) / count        # E[h]      (1, D)
        m2 = jnp.sum(w_t * jnp.dot(gram, w_t), axis=0,
                     keepdims=True) / count        # E[h^2]    (1, D)
        # TODO(synk): single-pass variance E[h^2]-mean^2 can cancel in f32 for
        # channels with a large mean; a mean-shifted second stats pass would be
        # more robust (BatchNorm here always uses batch stats, as in training).
        var = jnp.maximum(m2 - mean * mean, 0.0)
        scale = gamma.reshape(1, D).astype(jnp.float32) * lax.rsqrt(var + eps)
        w_f = w_t * scale                          # fold BN scale into weights
        b_f = beta.reshape(1, D).astype(jnp.float32) - mean * scale
    else:
        w_f = w_t
        b_f = (jnp.zeros((1, D), jnp.float32) if bias is None
               else bias.reshape(1, D).astype(jnp.float32))

    out_dtype = inputs.dtype
    # Feed the MXU in the input's native dtype (no up-cast of the big tensor).
    mxu_w = w_f.astype(jnp.bfloat16) if inputs.dtype == jnp.bfloat16 else w_f

    kernel = partial(_apply_kernel, tm=tm, n=N, d=D, last_vfe=last_layer)
    if last_layer:
        out_shape = jax.ShapeDtypeStruct((Mp, D), out_dtype)
        out_spec = pl.BlockSpec((tm, D), lambda i: (i, 0))
    else:
        out_shape = jax.ShapeDtypeStruct((Mp, N * 2 * D), out_dtype)
        out_spec = pl.BlockSpec((tm, N * 2 * D), lambda i: (i, 0))

    out = pl.pallas_call(
        kernel,
        grid=(grid_m,),
        in_specs=[
            pl.BlockSpec((R, Cin), lambda i: (i, 0)),
            pl.BlockSpec((Cin, D), lambda i: (0, 0)),
            pl.BlockSpec((1, D), lambda i: (0, 0)),
        ],
        out_specs=out_spec,
        out_shape=out_shape,
        compiler_params=cp_apply,
    )(x2d, mxu_w, b_f)

    if Mp != M:
        # TODO(synk): only taken when no multiple-of-8 tile divides M; costs an
        # extra HBM copy of the output.
        out = out[:M]

    if last_layer:
        return out.reshape(B, P, 1, D)
    return out.reshape(B, P, N, 2 * D)


# ----------------------------------------------------------------------------
# Pure-JAX reference mirroring the PyTorch forward (training-mode BN).
# ----------------------------------------------------------------------------
def pfn_ref(inputs, weight, gamma, beta, *, eps=1e-3, last_layer=False):
    x = jnp.einsum("bpnc,dc->bpnd", inputs, weight)
    mean = x.mean(axis=(0, 1, 2), keepdims=True)
    var = ((x - mean) ** 2).mean(axis=(0, 1, 2), keepdims=True)
    xn = (x - mean) / jnp.sqrt(var + eps) * gamma + beta
    xr = jax.nn.relu(xn)
    xmax = xr.max(axis=2, keepdims=True)
    if last_layer:
        return xmax
    return jnp.concatenate([xr, jnp.broadcast_to(xmax, xr.shape)], axis=-1)


if __name__ == "__main__":
    # PFNLayer usage-consistent small shapes: in_channels=10 point features,
    # out_channels=64 (-> D=32, not last layer), batch=2, pillars=8, N=16.
    B, P, N = 2, 8, 16
    in_channels, out_channels = 10, 64
    D1 = out_channels // 2  # 32 (not last layer)

    key = jax.random.PRNGKey(0)
    k_x, k_w, k_x2, k_w2 = jax.random.split(key, 4)
    inputs = jax.random.normal(k_x, (B, P, N, in_channels), dtype=jnp.float32)
    weight = jax.random.normal(k_w, (D1, in_channels), dtype=jnp.float32) * 0.1
    gamma = jnp.ones((D1,), dtype=jnp.float32)
    beta = jnp.zeros((D1,), dtype=jnp.float32)

    ref1 = pfn_ref(inputs, weight, gamma, beta, eps=1e-3, last_layer=False)

    # Multi-tile + dual-core-split stats path (tm=8 -> 2 tiles).
    out1 = pfn_layer(inputs, weight, gamma, beta,
                     eps=1e-3, last_layer=False, tm=8)
    out1 = jax.block_until_ready(out1)
    assert out1.shape == (B, P, N, 2 * D1), out1.shape
    assert jnp.allclose(out1, ref1, atol=5e-4, rtol=5e-4), float(
        jnp.max(jnp.abs(out1 - ref1)))

    # Auto tile-size path (single tile here).
    out1b = pfn_layer(inputs, weight, gamma, beta, eps=1e-3, last_layer=False)
    out1b = jax.block_until_ready(out1b)
    assert jnp.allclose(out1b, ref1, atol=5e-4, rtol=5e-4), float(
        jnp.max(jnp.abs(out1b - ref1)))

    # Second (last) layer configuration: in=64, out=64, last_layer=True.
    D2 = 64
    inputs2 = jax.random.normal(k_x2, (B, P, N, 2 * D1), dtype=jnp.float32)
    weight2 = jax.random.normal(k_w2, (D2, 2 * D1), dtype=jnp.float32) * 0.1
    gamma2 = jnp.ones((D2,), dtype=jnp.float32)
    beta2 = jnp.zeros((D2,), dtype=jnp.float32)

    out2 = pfn_layer(inputs2, weight2, gamma2, beta2,
                     eps=1e-3, last_layer=True, tm=8)
    out2 = jax.block_until_ready(out2)
    ref2 = pfn_ref(inputs2, weight2, gamma2, beta2, eps=1e-3, last_layer=True)
    assert out2.shape == (B, P, 1, D2), out2.shape
    assert jnp.allclose(out2, ref2, atol=5e-4, rtol=5e-4), float(
        jnp.max(jnp.abs(out2 - ref2)))

    print("KERNEL_OK")
</pallas_src>

<mosaic_0001>
module attributes {stable_mosaic.version = 11 : i64} {
  func.func @_stats_kernel(%arg0: i32, %arg1: i32, %arg2: memref<128x10xf32, #tpu.memory_space<vmem>>, %arg3: memref<1x1x10xf32, #tpu.memory_space<vmem>>, %arg4: memref<1x10x10xf32, #tpu.memory_space<vmem>>) attributes {dimension_semantics = [#tpu.dimension_semantics<parallel>, #tpu.dimension_semantics<arbitrary>], iteration_bounds = array<i64: 2, 1>, scalar_prefetch = 0 : i64, scratch_operands = 0 : i64, tpu.core_type = #tpu.core_type<tc>, window_params = [{transform_indices = @transform_0, window_bounds = array<i64: 128, 10>}, {transform_indices = @transform_1, window_bounds = array<i64: 1, 1, 10>}, {transform_indices = @transform_2, window_bounds = array<i64: 1, 10, 10>}]} {
    %c0_i32 = arith.constant 0 : i32
    %0 = arith.cmpi eq, %arg1, %c0_i32 : i32
    %1 = arith.extui %0 : i1 to i32
    %c0_i32_0 = arith.constant 0 : i32
    %2 = arith.cmpi ne, %1, %c0_i32_0 : i32
    scf.if %2 {
      %cst_15 = arith.constant 0.000000e+00 : f32
      %15 = vector.broadcast %cst_15 : f32 to vector<1x1x10xf32>
      %c0_16 = arith.constant 0 : index
      %c0_17 = arith.constant 0 : index
      %c0_18 = arith.constant 0 : index
      %16 = vector.load %arg3[%c0_16, %c0_17, %c0_18] : memref<1x1x10xf32, #tpu.memory_space<vmem>>, vector<1x1x10xf32>
      tpu.vector_store %arg3[%c0_16, %c0_17, %c0_18], %15 {strides = array<i32>} : memref<1x1x10xf32, #tpu.memory_space<vmem>>, vector<1x1x10xf32>,
      %cst_19 = arith.constant 0.000000e+00 : f32
      %17 = vector.broadcast %cst_19 : f32 to vector<1x10x10xf32>
      %c0_20 = arith.constant 0 : index
      %c0_21 = arith.constant 0 : index
      %c0_22 = arith.constant 0 : index
      %18 = vector.load %arg4[%c0_20, %c0_21, %c0_22] : memref<1x10x10xf32, #tpu.memory_space<vmem>>, vector<1x10x10xf32>
      tpu.vector_store %arg4[%c0_20, %c0_21, %c0_22], %17 {strides = array<i32>} : memref<1x10x10xf32, #tpu.memory_space<vmem>>, vector<1x10x10xf32>,
    } else {
    }
    %c0 = arith.constant 0 : index
    %c0_1 = arith.constant 0 : index
    %3 = vector.load %arg2[%c0, %c0_1] : memref<128x10xf32, #tpu.memory_space<vmem>>, vector<128x10xf32>
    %c0_2 = arith.constant 0 : index
    %c0_3 = arith.constant 0 : index
    %c0_4 = arith.constant 0 : index
    %4 = vector.load %arg3[%c0_2, %c0_3, %c0_4] : memref<1x1x10xf32, #tpu.memory_space<vmem>>, vector<1x1x10xf32>
    %cst = arith.constant dense<0.000000e+00> : vector<10xf32>
    %5 = vector.multi_reduction <add>, %3, %cst [0] : vector<128x10xf32> to vector<10xf32>
    %6 = vector.shape_cast %5 : vector<10xf32> to vector<1x10xf32>
    %7 = vector.shape_cast %6 : vector<1x10xf32> to vector<1x1x10xf32>
    %8 = arith.addf %4, %7 : vector<1x1x10xf32>
    %c0_5 = arith.constant 0 : index
    %c0_6 = arith.constant 0 : index
    %c0_7 = arith.constant 0 : index
    %9 = vector.load %arg3[%c0_5, %c0_6, %c0_7] : memref<1x1x10xf32, #tpu.memory_space<vmem>>, vector<1x1x10xf32>
    tpu.vector_store %arg3[%c0_5, %c0_6, %c0_7], %8 {strides = array<i32>} : memref<1x1x10xf32, #tpu.memory_space<vmem>>, vector<1x1x10xf32>,
    %c0_8 = arith.constant 0 : index
    %c0_9 = arith.constant 0 : index
    %c0_10 = arith.constant 0 : index
    %10 = vector.load %arg4[%c0_8, %c0_9, %c0_10] : memref<1x10x10xf32, #tpu.memory_space<vmem>>, vector<1x10x10xf32>
    %cst_11 = arith.constant dense<0.000000e+00> : vector<10x10xf32>
    %11 = tpu.matmul %3, %3, %cst_11 {dimension_numbers = #tpu.dot_dimension_numbers<[0], [0], [1], [1], [0, 1, 1, 1], [], []>} : vector<128x10xf32>, vector<128x10xf32>, vector<10x10xf32> -> vector<10x10xf32>
    %12 = vector.shape_cast %11 : vector<10x10xf32> to vector<1x10x10xf32>
    %13 = arith.addf %10, %12 : vector<1x10x10xf32>
    %c0_12 = arith.constant 0 : index
    %c0_13 = arith.constant 0 : index
    %c0_14 = arith.constant 0 : index
    %14 = vector.load %arg4[%c0_12, %c0_13, %c0_14] : memref<1x10x10xf32, #tpu.memory_space<vmem>>, vector<1x10x10xf32>
    tpu.vector_store %arg4[%c0_12, %c0_13, %c0_14], %13 {strides = array<i32>} : memref<1x10x10xf32, #tpu.memory_space<vmem>>, vector<1x10x10xf32>,
    return
  }
  func.func @transform_0(%arg0: i32, %arg1: i32) -> (i32, i32) {
    %c1_i32 = arith.constant 1 : i32
    %0 = arith.muli %arg0, %c1_i32 : i32
    %1 = arith.addi %0, %arg1 : i32
    %c0_i32 = arith.constant 0 : i32
    %c0_i32_0 = arith.constant 0 : i32
    return %1, %c0_i32 : i32, i32
  }
  func.func @transform_1(%arg0: i32, %arg1: i32) -> (i32, i32, i32) {
    %c0_i32 = arith.constant 0 : i32
    %c0_i32_0 = arith.constant 0 : i32
    %c0_i32_1 = arith.constant 0 : i32
    return %arg0, %c0_i32, %c0_i32_0 : i32, i32, i32
  }
  func.func @transform_2(%arg0: i32, %arg1: i32) -> (i32, i32, i32) {
    %c0_i32 = arith.constant 0 : i32
    %c0_i32_0 = arith.constant 0 : i32
    %c0_i32_1 = arith.constant 0 : i32
    return %arg0, %c0_i32, %c0_i32_0 : i32, i32, i32
  }
}

</mosaic_0001>

<llo_original>
// kernel: tpu_custom_call.1
$region0: #{tpu_custom_call.1}
  #allocation0 [shape = 'u32[]', space=smem, size = 0x4, offset = 0x4, fixed_abs, tag = 'smem constant byte address 0x4 - core index']
  #allocation1 [shape = 'u32[144,128]{1,0:T(1,128)}', space=vmem, size = 0x12000, scoped, tag = 'internal scratch']
  %s0 = inlined_call_operand.hbm [shape: f32[256,10], index: 0, kind: input, shape index: {}]
  %s1 = inlined_call_operand.hbm [shape: f32[2,1,10], index: 1, kind: output, shape index: {0}]
  %s2 = inlined_call_operand.hbm [shape: f32[2,10,10], index: 2, kind: output, shape index: {1}]
  %3 = xla_tuple %s1, %s2
  %s4 = sld [smem:[#allocation0]]
  $region53: #{tpu_custom_call.1} parent=0
    _
  %s6 = ssub.s32 1, %s4
  %s7 = scalar_select 0, %s6, %s4
  $region1: #{tpu_custom_call.1} parent=0
    #allocation2 [shape = 'u8[131072]{0}', space=vmem, size = 0x20000, scoped, tag = 'input window, operand 0']
    #allocation3 [shape = 's32[2]{0}', space=sflag, size = 0x8, scoped, tag = 'scoped memory for tpu_custom_call.1']
    #allocation4 [shape = 's32[2]{0}', space=sflag, size = 0x8, scoped, tag = 'scoped memory for tpu_custom_call.1']
    #allocation5 [shape = 'u8[1024]{0}', space=vmem, size = 0x400, scoped, tag = 'output window, operand 0']
    #allocation6 [shape = 'u8[16384]{0}', space=vmem, size = 0x4000, scoped, tag = 'output window, operand 1']
    #allocation7 [shape = 's32[2]{0}', space=sflag, size = 0x8, scoped, tag = 'scoped memory for tpu_custom_call.1']
    %8 = vsyncpa [#allocation3], 0
    %s9 = scalar_lea.sflag [#allocation3], 1
    %10 = vsyncpa %s9, 0
    %11 = vsyncpa [#allocation4], 0
    %s12 = scalar_lea.sflag [#allocation4], 1
    %13 = vsyncpa %s12, 0
    %14 = vsyncpa [#allocation7], 0
    %s15 = scalar_lea.sflag [#allocation7], 1
    %16 = vsyncpa %s15, 0
    loop: start=0, step=1, limit=4
    $region2: #{tpu_custom_call.1} parent=1 // loop_pre_header
      _
    $region3: #{tpu_custom_call.1} parent=1 // loop_header
      %s18 = sphi 0, %s22
      %p19 = scmp.ge.s32.totalorder %s18, 4
      %s25 = sphi 0, %s37
      %s26 = sphi 0, %s33
      %s27 = sphi 0, %s25
      %s28 = sphi 0, %s26
      %s29 = sphi 0, %s27
      %s30 = sphi 0, %s28
      %s42 = sphi 0, %s44
      %s45 = sphi 0, %s42
      %s46 = sphi 0, %s45
      %s62 = sphi 0, %s46
      %s68 = sphi 0, %s70
      %s71 = sphi 0, %s68
      %s72 = sphi 0, %s71
      %s88 = sphi 0, %s72
      %s94 = sphi 0, %s96
      %s97 = sphi 0, %s94
      %s98 = sphi 0, %s97
      %s114 = sphi 0, %s98
    $region4: #{tpu_custom_call.1} parent=1 // loop_header_branch
      %21 = sbr.rel (%p19) target = $region8
    $region5: #{tpu_custom_call.1} parent=1 // loop_body
      %s23 = ssub.s32 %s18, 1
      %s24 = ssub.s32 %s18, 2
      %s31 = sadd.s32 1, %s26
      %p32 = scmp.ge.s32.totalorder %s31, 1
      %s33 = scalar_select %p32, 0, %s31
      %s34 = sadd.s32 1, %s25
      %s35 = scalar_select %p32, %s34, %s25
      %p36 = scmp.ge.s32.totalorder %s35, 2
      %s37 = scalar_select %p36, 0, %s35
      %s38 = sadd.s32 %s25, %s26
      %s39 = sadd.s32 %s37, %s33
      %s40 = ssub.s32 %s38, %s39
      %p41 = scmp.eq.s32.totalorder %s40, 0
      %s43 = sadd.s32 %s42, 1
      %s44 = scalar_select %p41, %s42, %s43
      %p47 = pneg %p41
      %p48 = scmp.eq.s32.totalorder %s18, 1
      %p49 = por %p47, %p48
      %p50 = scmp.ne.s32.totalorder %s42, %s45
      %p51 = scmp.eq.s32.totalorder %s18, 0
      %p52 = por %p50, %p51
      %p53 = scmp.ne.s32.totalorder %s42, %s45
      %p54 = scmp.eq.s32.totalorder %s23, 1
      %p55 = por %p53, %p54
      %p56 = scmp.ne.s32.totalorder %s45, %s46
      %p57 = scmp.eq.s32.totalorder %s23, 0
      %p58 = por %p56, %p57
      %p59 = scmp.ne.s32.totalorder %s45, %s46
      %p60 = scmp.eq.s32.totalorder %s24, 1
      %p61 = por %p59, %p60
      %p63 = scmp.ne.s32.totalorder %s46, %s62
      %p64 = scmp.eq.s32.totalorder %s24, 0
      %p65 = por %p63, %p64
      %s66 = ssub.s32 %s25, %s37
      %p67 = scmp.eq.s32.totalorder %s66, 0
      %s69 = sadd.s32 %s68, 1
      %s70 = scalar_select %p67, %s68, %s69
      %p73 = pneg %p67
      %p74 = scmp.eq.s32.totalorder %s18, 1
      %p75 = por %p73, %p74
      %p76 = scmp.ne.s32.totalorder %s68, %s71
      %p77 = scmp.eq.s32.totalorder %s18, 0
      %p78 = por %p76, %p77
      %p79 = scmp.ne.s32.totalorder %s68, %s71
      %p80 = scmp.eq.s32.totalorder %s23, 1
      %p81 = por %p79, %p80
      %p82 = scmp.ne.s32.totalorder %s71, %s72
      %p83 = scmp.eq.s32.totalorder %s23, 0
      %p84 = por %p82, %p83
      %p85 = scmp.ne.s32.totalorder %s71, %s72
      %p86 = scmp.eq.s32.totalorder %s24, 1
      %p87 = por %p85, %p86
      %p89 = scmp.ne.s32.totalorder %s72, %s88
      %p90 = scmp.eq.s32.totalorder %s24, 0
      %p91 = por %p89, %p90
      %s92 = ssub.s32 %s25, %s37
      %p93 = scmp.eq.s32.totalorder %s92, 0
      %s95 = sadd.s32 %s94, 1
      %s96 = scalar_select %p93, %s94, %s95
      %p99 = pneg %p93
      %p100 = scmp.eq.s32.totalorder %s18, 1
      %p101 = por %p99, %p100
      %p102 = scmp.ne.s32.totalorder %s94, %s97
      %p103 = scmp.eq.s32.totalorder %s18, 0
      %p104 = por %p102, %p103
      %p105 = scmp.ne.s32.totalorder %s94, %s97
      %p106 = scmp.eq.s32.totalorder %s23, 1
      %p107 = por %p105, %p106
      %p108 = scmp.ne.s32.totalorder %s97, %s98
      %p109 = scmp.eq.s32.totalorder %s23, 0
      %p110 = por %p108, %p109
      %p111 = scmp.ne.s32.totalorder %s97, %s98
      %p112 = scmp.eq.s32.totalorder %s24, 1
      %p113 = por %p111, %p112
      %p115 = scmp.ne.s32.totalorder %s98, %s114
      %p116 = scmp.eq.s32.totalorder %s24, 0
      %p117 = por %p115, %p116
      %p118 = scmp.le.s32.totalorder 1, %s18
      %p119 = scmp.lt.s32.totalorder %s18, 3
      %p120 = pnand %p118, %p119
      %p121 = pneg %p120
      // Predicated region
      $region9: #{tpu_custom_call.1} parent=5 // pred_check
        _
      $region10: #{tpu_custom_call.1} parent=5 // pred_check_branch
        %123 = sbr.rel (%p120) target = $region12
      $region11: #{tpu_custom_call.1} parent=5 // pred_region
        %s124 = ssub.s32 %s18, 1
      $region12: #{tpu_custom_call.1} parent=5 // pred_fallthru
        _
      %p125 = scmp.lt.s32.totalorder %s18, 2
      // Predicated region
      $region13: #{tpu_custom_call.1} parent=5 // pred_check
        %p126 = pneg %p125
      $region14: #{tpu_custom_call.1} parent=5 // pred_check_branch
        %128 = sbr.rel (%p126) target = $region16
      $region15: #{tpu_custom_call.1} parent=5 // pred_region
        // Predicated region
        $region17: #{tpu_custom_call.1} parent=15 // pred_check
          %p129 = pneg %p52
        $region18: #{tpu_custom_call.1} parent=15 // pred_check_branch
          %131 = sbr.rel (%p129) target = $region20
        $region19: #{tpu_custom_call.1} parent=15 // pred_region
          %s132 = sand.u32 %s42, 1
          %s133 = scalar_lea.sflag [#allocation3], %s132
          %s134 = sand.u32 %s42, 1
          %s135 = smul.addr %s134, 128
          %s136 = scalar_lea.vmem [#allocation2], %s135
          %s137 = sadd.s32 %s25, %s26
          %s138 = smul.u32 16, %s137
          %s140 = ssub.s32 2048, 2048
          %141 = vsyncadd %s133, %s140
          %s142 = smul.addr %s138, 128
          %s143 = scalar_lea.hbm %s0, %s142
          %s144 = sshll.u32 %s136, 4
          %s145 = int_to_ptr.vmem [resolvable:$true] %s144
          %150 = dma.hbm_to_vmem [thread:$0]  %s143, 2048, %s145, %s133, 128, 128, 8
        $region20: #{tpu_custom_call.1} parent=15 // pred_fallthru
          _
      $region16: #{tpu_custom_call.1} parent=5 // pred_fallthru
        _
      %p151 = scmp.le.s32.totalorder 1, %s18
      %p152 = scmp.lt.s32.totalorder %s18, 3
      %p153 = pnand %p151, %p152
      %p154 = pneg %p153
      // Predicated region
      $region21: #{tpu_custom_call.1} parent=5 // pred_check
        _
      $region22: #{tpu_custom_call.1} parent=5 // pred_check_branch
        %156 = sbr.rel (%p153) target = $region24
      $region23: #{tpu_custom_call.1} parent=5 // pred_region
        %s157 = ssub.s32 %s18, 1
        %s158 = sand.u32 %s45, 1
        %s159 = scalar_lea.sflag [#allocation3], %s158
        %s160 = sand.u32 %s45, 1
        %s161 = smul.addr %s160, 128
        %s162 = scalar_lea.vmem [#allocation2], %s161
        // Predicated region
        $region25: #{tpu_custom_call.1} parent=23 // pred_check
          %p163 = pneg %p58
        $region26: #{tpu_custom_call.1} parent=23 // pred_check_branch
          %165 = sbr.rel (%p163) target = $region28
        $region27: #{tpu_custom_call.1} parent=23 // pred_region
          %166 = dma.done %s159, 2048
        $region28: #{tpu_custom_call.1} parent=23 // pred_fallthru
          _
        %s167 = sand.u32 %s45, 1
        %s168 = scalar_lea.sflag [#allocation3], %s167
        %s169 = sand.u32 %s45, 1
        %s170 = smul.addr %s169, 128
        %s171 = scalar_lea.vmem [#allocation2], %s170
        %p172 = pneg %p58
        %p173 = pneg %p55
        %p174 = pneg %p84
        %p175 = pneg %p81
        %s176 = sand.u32 %s71, 1
        %s177 = scalar_lea.sflag [#allocation4], %s176
        %s178 = sand.u32 %s71, 1
        %s179 = scalar_lea.vmem [#allocation5], %s178
        %p180 = pneg %p110
        %p181 = pneg %p107
        %s182 = sand.u32 %s97, 1
        %s183 = scalar_lea.sflag [#allocation7], %s182
        %s184 = sand.u32 %s97, 1
        %s185 = smul.addr %s184, 16
        %s186 = scalar_lea.vmem [#allocation6], %s185
        %s187 = sadd.s32 %s27, %s28
        %s188 = smul.u32 16, %s187
        %p189 = scmp.eq.s32.totalorder %s28, 0
        // Predicated region
        $region29: #{tpu_custom_call.1} parent=23 // pred_check
          %p190 = pneg %p189
        $region30: #{tpu_custom_call.1} parent=23 // pred_check_branch
          %192 = sbr.rel (%p190) target = $region32
        $region31: #{tpu_custom_call.1} parent=23 // pred_region
          %vm193 = vcmask 73728
          %194 = vst.msk [vmem:[%s179] sm:$0x1] %vm193, 0.0
          %vm195 = vcmask 80896
          %196 = vst.msk [vmem:[%s186] sm:$0xff] %vm195, 0.0
          %vm197 = vcmask 74752
          %198 = vst.msk [vmem:[%s186 + $0x8] sm:$0x3] %vm197, 0.0
        $region32: #{tpu_custom_call.1} parent=23 // pred_fallthru
          _
        %v199 = vld [vmem:[%s162] sm:$0xff]
        %v200 = vld [vmem:[%s162 + $0x8] sm:$0xff]
        %v201 = vld [vmem:[%s162 + $0x10] sm:$0xff]
        %v202 = vld [vmem:[%s162 + $0x18] sm:$0xff]
        %v203 = vld [vmem:[%s162 + $0x20] sm:$0xff]
        %v204 = vld [vmem:[%s162 + $0x28] sm:$0xff]
        %v205 = vld [vmem:[%s162 + $0x30] sm:$0xff]
        %v206 = vld [vmem:[%s162 + $0x38] sm:$0xff]
        %v207 = vld [vmem:[%s162 + $0x40] sm:$0xff]
        %v208 = vld [vmem:[%s162 + $0x48] sm:$0xff]
        %v209 = vld [vmem:[%s162 + $0x50] sm:$0xff]
        %v210 = vld [vmem:[%s162 + $0x58] sm:$0xff]
        %v211 = vld [vmem:[%s162 + $0x60] sm:$0xff]
        %v212 = vld [vmem:[%s162 + $0x68] sm:$0xff]
        %v213 = vld [vmem:[%s162 + $0x70] sm:$0xff]
        %v214 = vld [vmem:[%s162 + $0x78] sm:$0xff]
        %v215 = vld [vmem:[%s179] sm:$0x1]
        %vm216 = vcmask 80896
        %v217 = vsel %vm216, %v199, 0.0
        %v218 = vsel %vm216, %v200, 0.0
        %v219 = vadd.f32 %v217, %v218
        %v220 = vsel %vm216, %v201, 0.0
        %v221 = vadd.f32 %v219, %v220
        %v222 = vsel %vm216, %v202, 0.0
        %v223 = vadd.f32 %v221, %v222
        %v224 = vsel %vm216, %v203, 0.0
        %v225 = vadd.f32 %v223, %v224
        %v226 = vsel %vm216, %v204, 0.0
        %v227 = vadd.f32 %v225, %v226
        %v228 = vsel %vm216, %v205, 0.0
        %v229 = vadd.f32 %v227, %v228
        %v230 = vsel %vm216, %v206, 0.0
        %v231 = vadd.f32 %v229, %v230
        %v232 = vsel %vm216, %v207, 0.0
        %v233 = vadd.f32 %v231, %v232
        %v234 = vsel %vm216, %v208, 0.0
        %v235 = vadd.f32 %v233, %v234
        %v236 = vsel %vm216, %v209, 0.0
        %v237 = vadd.f32 %v235, %v236
        %v238 = vsel %vm216, %v210, 0.0
        %v239 = vadd.f32 %v237, %v238
        %v240 = vsel %vm216, %v211, 0.0
        %v241 = vadd.f32 %v239, %v240
        %v242 = vsel %vm216, %v212, 0.0
        %v243 = vadd.f32 %v241, %v242
        %v244 = vsel %vm216, %v213, 0.0
        %v245 = vadd.f32 %v243, %v244
        %v246 = vsel %vm216, %v214, 0.0
        %v247 = vadd.f32 %v245, %v246
        %v248 = vrot.slane %v247, 4
        %v249 = vadd.f32 %v247, %v248
        %v250 = vrot.slane %v249, 2
        %v251 = vadd.f32 %v249, %v250
        %v252 = vrot.slane %v251, 1
        %v253 = vadd.f32 %v251, %v252
        %v254 = vadd.f32 %v215, %v253
        %vm255 = vcmask 73728
        %256 = vst.msk [vmem:[%s179] sm:$0x1] %vm255, %v254
        %v257 = vld [vmem:[%s186] sm:$0xff]
        %v258 = vld [vmem:[%s186 + $0x8] sm:$0x3]
        %259 = vxpose.xlu0.b32.start [1/16] %v199, 128
        %260 = vxpose.xlu0.b32.cont [2/16] %v200, 128
        %261 = vxpose.xlu0.b32.cont [3/16] %v201, 128
        %262 = vxpose.xlu0.b32.cont [4/16] %v202, 128
        %263 = vxpose.xlu0.b32.cont [5/16] %v203, 128
        %264 = vxpose.xlu0.b32.cont [6/16] %v204, 128
        %265 = vxpose.xlu0.b32.cont [7/16] %v205, 128
        %266 = vxpose.xlu0.b32.cont [8/16] %v206, 128
        %267 = vxpose.xlu0.b32.cont [9/16] %v207, 128
        %268 = vxpose.xlu0.b32.cont [10/16] %v208, 128
        %269 = vxpose.xlu0.b32.cont [11/16] %v209, 128
        %270 = vxpose.xlu0.b32.cont [12/16] %v210, 128
        %271 = vxpose.xlu0.b32.cont [13/16] %v211, 128
        %272 = vxpose.xlu0.b32.cont [14/16] %v212, 128
        %273 = vxpose.xlu0.b32.cont [15/16] %v213, 128
        %274 = vxpose.xlu0.b32.end [16/16] %v214, 128
        %v275 = vpop.trf.xlu0
        %v276 = vpop.trf.xlu0
        %v277 = vpop.trf.xlu0
        %v278 = vpop.trf.xlu0
        %v279 = vpop.trf.xlu0
        %v280 = vpop.trf.xlu0
        %v281 = vpop.trf.xlu0
        %v282 = vpop.trf.xlu0
        %v283 = vpop.trf.xlu0
        %v284 = vpop.trf.xlu0
        %v285 = vpop.trf.xlu0
        %v286 = vpop.trf.xlu0
        %v287 = vpop.trf.xlu0
        %v288 = vpop.trf.xlu0
        %v289 = vpop.trf.xlu0
        %v290 = vpop.trf.xlu0
        %291 = vmatprep.subr.mxu0 0.0
        %292 = vmatpush1.msra.mxu0 %v199
        %293 = vmatprep.subr.mxu0 0.0
        %294 = vmatpush1.msra.mxu0 %v200
        %295 = vmatprep.subr.mxu0 0.0
        %296 = vmatpush1.msra.mxu0 %v201
        %297 = vmatprep.subr.mxu0 0.0
        %298 = vmatpush1.msra.mxu0 %v202
        %299 = vmatprep.subr.mxu0 0.0
        %300 = vmatpush1.msra.mxu0 %v203
        %301 = vmatprep.subr.mxu0 0.0
        %302 = vmatpush1.msra.mxu0 %v204
        %303 = vmatprep.subr.mxu0 0.0
        %304 = vmatpush1.msra.mxu0 %v205
        %305 = vmatprep.subr.mxu0 0.0
        %306 = vmatpush1.msra.mxu0 %v206
        %307 = vmatprep.subr.mxu0 0.0
        %308 = vmatpush1.msra.mxu0 %v207
        %309 = vmatprep.subr.mxu0 0.0
        %310 = vmatpush1.msra.mxu0 %v208
        %311 = vmatprep.subr.mxu0 0.0
        %312 = vmatpush1.msra.mxu0 %v209
        %313 = vmatprep.subr.mxu0 0.0
        %314 = vmatpush1.msra.mxu0 %v210
        %315 = vmatprep.subr.mxu0 0.0
        %316 = vmatpush1.msra.mxu0 %v211
        %317 = vmatprep.subr.mxu0 0.0
        %318 = vmatpush1.msra.mxu0 %v212
        %319 = vmatprep.subr.mxu0 0.0
        %320 = vmatpush1.msra.mxu0 %v213
        %321 = vmatprep.subr.mxu0 0.0
        %322 = vmatpush1.msra.mxu0 %v214
        %323 = vmatprep.subr.mxu0 0.0
        %324 = vmatpush1.msra.mxu0 0.0
        %325 = vmatprep.subr.mxu0 0.0
        %326 = vmatpush1.msra.mxu0 0.0
        %327 = vmatprep.subr.mxu0 0.0
        %328 = vmatpush1.msra.mxu0 0.0
        %329 = vmatprep.subr.mxu0 0.0
        %330 = vmatpush1.msra.mxu0 0.0
        %331 = vmatprep.subr.mxu0 0.0
        %332 = vmatpush1.msra.mxu0 0.0
        %333 = vmatprep.subr.mxu0 0.0
        %334 = vmatpush1.msra.mxu0 0.0
        %335 = vmatprep.subr.mxu0 0.0
        %336 = vmatpush1.msra.mxu0 0.0
        %337 = vmatprep.subr.mxu0 0.0
        %338 = vmatpush1.msra.mxu0 0.0
        %339 = vmatprep.subr.mxu0 0.0
        %340 = vmatpush1.msra.mxu0 0.0
        %341 = vmatprep.subr.mxu0 0.0
        %342 = vmatpush1.msra.mxu0 0.0
        %343 = vmatprep.subr.mxu0 0.0
        %344 = vmatpush1.msra.mxu0 0.0
        %345 = vmatprep.subr.mxu0 0.0
        %346 = vmatpush1.msra.mxu0 0.0
        %347 = vmatprep.subr.mxu0 0.0
        %348 = vmatpush1.msra.mxu0 0.0
        %349 = vmatprep.subr.mxu0 0.0
        %350 = vmatpush1.msra.mxu0 0.0
        %351 = vmatprep.subr.mxu0 0.0
        %352 = vmatpush1.msra.mxu0 0.0
        %353 = vmatprep.subr.mxu0 0.0
        %354 = vmatpush1.msra.mxu0 0.0
        %355 = vmatprep.mubr.f32.mxu0 0.0
        %356 = vmatmul.mubr.f32.gmra.mrb[0].mxu0 %v275
        %v357 = vpop.f32.mrb[0].mxu0
        %v358 = vadd.f32 0.0, %v357
        %v359 = vpop.f32.mrb[0].mxu0
        %360 = vmatprep.mubr.f32.mxu0 0.0
        %361 = vmatmul.mubr.f32.gmra.mrb[0].mxu0 %v276
        %v362 = vpop.f32.mrb[0].mxu0
        %v363 = vadd.f32 0.0, %v362
        %v364 = vpop.f32.mrb[0].mxu0
        %365 = vdwg.mxu0
        %v366 = vadd.f32 %v257, %v358
        %v367 = vadd.f32 %v258, %v363
        %368 = vst.msk [vmem:[%s186] sm:$0xff] %vm216, %v366
        %vm369 = vcmask 74752
        %370 = vst.msk [vmem:[%s186 + $0x8] sm:$0x3] %vm369, %v367
        %s371 = sand.u32 %s71, 1
        %s372 = scalar_lea.sflag [#allocation4], %s371
        %s373 = sand.u32 %s71, 1
        %s374 = scalar_lea.vmem [#allocation5], %s373
        %s375 = sand.u32 %s97, 1
        %s376 = scalar_lea.sflag [#allocation7], %s375
        %s377 = sand.u32 %s97, 1
        %s378 = smul.addr %s377, 16
        %s379 = scalar_lea.vmem [#allocation6], %s378
        // Predicated region
        $region33: #{tpu_custom_call.1} parent=23 // pred_check
          %p380 = pneg %p81
        $region34: #{tpu_custom_call.1} parent=23 // pred_check_branch
          %382 = sbr.rel (%p380) target = $region36
        $region35: #{tpu_custom_call.1} parent=23 // pred_region
          %s384 = ssub.s32 16, 16
          %385 = vsyncadd %s372, %s384
          %s386 = smul.addr %s27, 16
          %s387 = scalar_lea.hbm %s1, %s386
          %s389 = sshll.u32 %s374, 4
          %s390 = int_to_ptr.vmem [resolvable:$true] %s389
          %392 = dma.vmem_to_hbm [thread:$0]  %s390, 16, %s387, %s372
        $region36: #{tpu_custom_call.1} parent=23 // pred_fallthru
          _
        // Predicated region
        $region37: #{tpu_custom_call.1} parent=23 // pred_check
          %p393 = pneg %p107
        $region38: #{tpu_custom_call.1} parent=23 // pred_check_branch
          %395 = sbr.rel (%p393) target = $region40
        $region39: #{tpu_custom_call.1} parent=23 // pred_region
          %s397 = ssub.s32 256, 256
          %398 = vsyncadd %s376, %s397
          %s399 = smul.addr %s27, 2
          %s400 = smul.addr %s399, 128
          %s401 = scalar_lea.hbm %s2, %s400
          %s402 = sshll.u32 %s379, 4
          %s403 = int_to_ptr.vmem [resolvable:$true] %s402
          %408 = dma.vmem_to_hbm [thread:$0]  %s403, 256, %s401, %s376, 128, 128, 8
        $region40: #{tpu_custom_call.1} parent=23 // pred_fallthru
          _
      $region24: #{tpu_custom_call.1} parent=5 // pred_fallthru
        _
      %p409 = scmp.le.s32.totalorder 2, %s18
      // Predicated region
      $region41: #{tpu_custom_call.1} parent=5 // pred_check
        %p410 = pneg %p409
      $region42: #{tpu_custom_call.1} parent=5 // pred_check_branch
        %412 = sbr.rel (%p410) target = $region44
      $region43: #{tpu_custom_call.1} parent=5 // pred_region
        %s413 = ssub.s32 %s18, 2
        // Predicated region
        $region45: #{tpu_custom_call.1} parent=43 // pred_check
          %p414 = pneg %p87
        $region46: #{tpu_custom_call.1} parent=43 // pred_check_branch
          %416 = sbr.rel (%p414) target = $region48
        $region47: #{tpu_custom_call.1} parent=43 // pred_region
          %s417 = sand.u32 %s72, 1
          %s418 = scalar_lea.sflag [#allocation4], %s417
          %s419 = sand.u32 %s72, 1
          %s420 = scalar_lea.vmem [#allocation5], %s419
          %421 = dma.done %s418, 16
        $region48: #{tpu_custom_call.1} parent=43 // pred_fallthru
          _
        // Predicated region
        $region49: #{tpu_custom_call.1} parent=43 // pred_check
          %p422 = pneg %p113
        $region50: #{tpu_custom_call.1} parent=43 // pred_check_branch
          %424 = sbr.rel (%p422) target = $region52
        $region51: #{tpu_custom_call.1} parent=43 // pred_region
          %s425 = sand.u32 %s98, 1
          %s426 = scalar_lea.sflag [#allocation7], %s425
          %s427 = sand.u32 %s98, 1
          %s428 = smul.addr %s427, 16
          %s429 = scalar_lea.vmem [#allocation6], %s428
          %430 = dma.done %s426, 256
        $region52: #{tpu_custom_call.1} parent=43 // pred_fallthru
          _
      $region44: #{tpu_custom_call.1} parent=5 // pred_fallthru
        _
    $region6: #{tpu_custom_call.1} parent=1 // loop_footer
      %s22 = sadd.s32 1, %s18
    $region7: #{tpu_custom_call.1} parent=1 // loop_footer_branch
      %17 = sbr.rel target = $region3
    $region8: #{tpu_custom_call.1} parent=1 // loop_exit
      _
    %431 = vsyncpa [#allocation3], 1
    %s432 = scalar_lea.sflag [#allocation3], 1
    %433 = vsyncpa %s432, 1
    %434 = vsyncpa [#allocation4], 1
    %s435 = scalar_lea.sflag [#allocation4], 1
    %436 = vsyncpa %s435, 1
    %437 = vsyncpa [#allocation7], 1
    %s438 = scalar_lea.sflag [#allocation7], 1
    %439 = vsyncpa %s438, 1

</llo_original>
